<compile_context>
chip_gen: v6e
topology: v6e:2x2x1
jax: 0.10.0
libtpu: 0.0.40
codegen_flags: <defaults>
</compile_context>

<pallas_src>
import functools

import jax
import jax.numpy as jnp
import numpy as np
from jax import lax
from jax.experimental import pallas as pl
from jax.experimental.pallas import tpu as pltpu

BN_EPS = 1e-5
_LANE = 128


# --------------------------------------------------------------------------
# VMEM sizing / tiling helpers
# --------------------------------------------------------------------------

_VMEM_LIMIT = None


def _vmem_limit():
    """Scoped-VMEM request: <= 3/4 of physical VMEM (48 MiB on v7x, 96 on v5e/v6e)."""
    global _VMEM_LIMIT
    if _VMEM_LIMIT is None:
        try:
            cap = int(pltpu.get_tpu_info().vmem_capacity_bytes)
        except Exception:
            cap = 64 * 1024 * 1024
        _VMEM_LIMIT = max(32 * 1024 * 1024, min((cap * 3) // 4, 96 * 1024 * 1024))
    return _VMEM_LIMIT


def _block_budget():
    return max(8 * 1024 * 1024, _vmem_limit() // 4)


def _cparams(dims):
    return pltpu.CompilerParams(dimension_semantics=dims,
                                vmem_limit_bytes=_vmem_limit())


def _choose_ipt(n_imgs, hw, per_lane_bytes, budget, preferred=None):
    """Images per tile.  Tiles always cover whole images so any N/H/W works
    (no `M % tile` asserts); prefer lane widths that are multiples of 128."""
    per_lane_bytes = max(int(per_lane_bytes), 1)
    divs = [d for d in range(1, n_imgs + 1) if n_imgs % d == 0]
    ok = lambda d: ((d * hw) % _LANE == 0) or (d == n_imgs)
    fits = lambda d: d * hw * per_lane_bytes <= budget
    if preferred is not None and preferred in divs and ok(preferred) and fits(preferred):
        return preferred
    good = [d for d in divs if ok(d) and fits(d)]
    if good:
        return max(good)
    fitting = [d for d in divs if fits(d)]
    if fitting:
        return max(fitting)
    return 1


def _split_cores(total):
    """Split the reduction grid across two TensorCores (v7x) when possible."""
    nc = 2 if (total >= 2 and total % 2 == 0) else 1
    return nc, total // nc


# --------------------------------------------------------------------------
# In-kernel helpers
# --------------------------------------------------------------------------

def _accum_stats(sum_ref, ssq_ref, y):
    """Accumulate per-channel sum / sum-of-squares of y (C, TM) into lane-dense
    (C, 128) accumulators with VPU slab adds (no XLU lane reductions)."""
    tm = y.shape[1]
    nfull = tm // _LANE
    if nfull:
        s = y[:, :_LANE]
        q = s * s
        for t in range(1, nfull):
            blk = y[:, t * _LANE:(t + 1) * _LANE]
            s = s + blk
            q = q + blk * blk
        sum_ref[...] += s
        ssq_ref[...] += q
    rem = tm - nfull * _LANE
    if rem:
        blk = y[:, nfull * _LANE:]
        sum_ref[:, :rem] += blk
        ssq_ref[:, :rem] += blk * blk


# --------------------------------------------------------------------------
# Kernels
# --------------------------------------------------------------------------

def _mm_stats_y_kernel(x_ref, w_ref, y_ref, sum_ref, ssq_ref, *, compute_dtype):
    """y = w @ x, written once (storage dtype) + batch-stat accumulation."""
    @pl.when(pl.program_id(1) == 0)
    def _init():
        sum_ref[...] = jnp.zeros_like(sum_ref)
        ssq_ref[...] = jnp.zeros_like(ssq_ref)

    y = jnp.dot(w_ref[...].astype(compute_dtype), x_ref[...].astype(compute_dtype),
                preferred_element_type=jnp.float32)
    ys = y.astype(y_ref.dtype)
    y_ref[...] = ys                       # stats below use exactly the stored y
    _accum_stats(sum_ref, ssq_ref, ys.astype(jnp.float32))


def _apply_kernel(y_ref, sc_ref, sh_ref, o_ref, *, relu):
    """Pure elementwise folded-BN apply (only used on the im2col fallback path)."""
    v = y_ref[...].astype(jnp.float32) * sc_ref[...] + sh_ref[...]
    if relu:
        v = jnp.maximum(v, 0.0)
    o_ref[...] = v.astype(o_ref.dtype)


def _conv2_kernel(y1_ref, sc1_ref, sh1_ref, w2_ref, y2_ref, sum_ref, ssq_ref,
                  *, H, W, taps, compute_dtype):
    """3x3 stride-1 conv as 9 lane-shifted matmul-accumulates on the
    VMEM-resident tile; bn1+relu fused in so out1 never touches HBM."""
    @pl.when(pl.program_id(1) == 0)
    def _init():
        sum_ref[...] = jnp.zeros_like(sum_ref)
        ssq_ref[...] = jnp.zeros_like(ssq_ref)

    out1 = jnp.maximum(y1_ref[...].astype(jnp.float32) * sc1_ref[...] + sh1_ref[...], 0.0)
    tm = out1.shape[1]
    pos = lax.broadcasted_iota(jnp.int32, (1, tm), 1) % (H * W)
    hh = pos // W
    ww = pos - hh * W
    acc = None
    for _, (dh, dw, shift) in enumerate(taps):
        tap = out1 if shift == 0 else pltpu.roll(out1, shift, axis=1)
        if dh != 0 or dw != 0:            # zero the padding / wrap positions
            valid = ((hh + dh >= 0) & (hh + dh < H) &
                     (ww + dw >= 0) & (ww + dw < W))
            tap = jnp.where(valid, tap, 0.0)
        contrib = jnp.dot(w2_ref[taps.index((dh, dw, shift))].astype(compute_dtype),
                          tap.astype(compute_dtype),
                          preferred_element_type=jnp.float32)
        acc = contrib if acc is None else acc + contrib
    y2s = acc.astype(y2_ref.dtype)
    y2_ref[...] = y2s
    _accum_stats(sum_ref, ssq_ref, y2s.astype(jnp.float32))


def _tail_stats_kernel(y2_ref, sc2_ref, sh2_ref, w3_ref, *rest, proj, compute_dtype):
    """bn2+relu in-register (out2 never hits HBM) -> conv3 (+shortcut) stats."""
    if proj:
        xs_ref, ws_ref, sum3_ref, ssq3_ref, sums_ref, ssqs_ref = rest
    else:
        sum3_ref, ssq3_ref = rest

    @pl.when(pl.program_id(1) == 0)
    def _init():
        sum3_ref[...] = jnp.zeros_like(sum3_ref)
        ssq3_ref[...] = jnp.zeros_like(ssq3_ref)
        if proj:
            sums_ref[...] = jnp.zeros_like(sums_ref)
            ssqs_ref[...] = jnp.zeros_like(ssqs_ref)

    out2 = jnp.maximum(y2_ref[...].astype(jnp.float32) * sc2_ref[...] + sh2_ref[...], 0.0)
    out2 = out2.astype(compute_dtype)
    y3 = jnp.dot(w3_ref[...].astype(compute_dtype), out2,
                 preferred_element_type=jnp.float32)
    _accum_stats(sum3_ref, ssq3_ref, y3)
    if proj:
        ysc = jnp.dot(ws_ref[...].astype(compute_dtype), xs_ref[...].astype(compute_dtype),
                      preferred_element_type=jnp.float32)
        _accum_stats(sums_ref, ssqs_ref, ysc)


def _tail_apply_kernel(y2_ref, sc2_ref, sh2_ref, w3_ref, sc3_ref, sh3_ref, *rest,
                       proj, compute_dtype):
    """out = relu(bn3(conv3(relu(bn2(y2)))) + shortcut)."""
    if proj:
        xs_ref, ws_ref, scs_ref, shs_ref, o_ref = rest
    else:
        res_ref, o_ref = rest
    out2 = jnp.maximum(y2_ref[...].astype(jnp.float32) * sc2_ref[...] + sh2_ref[...], 0.0)
    out2 = out2.astype(compute_dtype)
    acc = jnp.dot(w3_ref[...].astype(compute_dtype), out2,
                  preferred_element_type=jnp.float32)
    acc = acc * sc3_ref[...] + sh3_ref[...]
    if proj:
        ysc = jnp.dot(ws_ref[...].astype(compute_dtype), xs_ref[...].astype(compute_dtype),
                      preferred_element_type=jnp.float32)
        acc = acc + (ysc * scs_ref[...] + shs_ref[...])
    else:
        acc = acc + res_ref[...].astype(jnp.float32)
    o_ref[...] = jnp.maximum(acc, 0.0).astype(o_ref.dtype)


# --------------------------------------------------------------------------
# pallas_call wrappers
# --------------------------------------------------------------------------

def _matmul_stats_y(x_t, w, n_imgs, hw, *, dtype, ipt_pref=None):
    """y = w @ x (single pass): y written once + (C, nc*128) sum/ssq accumulators."""
    K, M = x_t.shape
    C = w.shape[0]
    isz = jnp.dtype(dtype).itemsize
    per_lane = 2 * isz * (K + C) + 8 * C
    fixed = 2 * C * K * isz + 4 * C * _LANE * 4
    ipt = _choose_ipt(n_imgs, hw, per_lane, _block_budget() - fixed, ipt_pref)
    tm = ipt * hw
    nc, steps = _split_cores(n_imgs // ipt)
    kern = functools.partial(_mm_stats_y_kernel, compute_dtype=dtype)
    return pl.pallas_call(
        kern,
        grid=(nc, steps),
        in_specs=[
            pl.BlockSpec((K, tm), lambda c, i, s=steps: (0, c * s + i)),
            pl.BlockSpec((C, K), lambda c, i: (0, 0)),
        ],
        out_specs=[
            pl.BlockSpec((C, tm), lambda c, i, s=steps: (0, c * s + i)),
            pl.BlockSpec((C, _LANE), lambda c, i: (0, c)),
            pl.BlockSpec((C, _LANE), lambda c, i: (0, c)),
        ],
        out_shape=[
            jax.ShapeDtypeStruct((C, M), dtype),
            jax.ShapeDtypeStruct((C, nc * _LANE), jnp.float32),
            jax.ShapeDtypeStruct((C, nc * _LANE), jnp.float32),
        ],
        compiler_params=_cparams(("parallel", "arbitrary")),
    )(x_t, w)


def _bn_apply(y, scale, shift, n_imgs, hw, *, relu, out_dtype, ipt_pref=None):
    C, M = y.shape
    per_lane = 2 * C * (jnp.dtype(y.dtype).itemsize + jnp.dtype(out_dtype).itemsize)
    ipt = _choose_ipt(n_imgs, hw, per_lane, _block_budget(), ipt_pref)
    tm = ipt * hw
    steps = n_imgs // ipt
    kern = functools.partial(_apply_kernel, relu=relu)
    return pl.pallas_call(
        kern,
        grid=(steps,),
        in_specs=[
            pl.BlockSpec((C, tm), lambda i: (0, i)),
            pl.BlockSpec((C, 1), lambda i: (0, 0)),
            pl.BlockSpec((C, 1), lambda i: (0, 0)),
        ],
        out_specs=pl.BlockSpec((C, tm), lambda i: (0, i)),
        out_shape=jax.ShapeDtypeStruct((C, M), out_dtype),
        compiler_params=_cparams(("parallel",)),
    )(y, scale, shift)


class _RollPathUnavailable(Exception):
    pass


_ROLL_SIGN = None


def _roll_sign():
    """Probe pltpu.roll's direction once so tap shifts use the right sign."""
    global _ROLL_SIGN
    if _ROLL_SIGN is None:
        def k(x_ref, o_ref):
            o_ref[...] = pltpu.roll(x_ref[...], 1, axis=1)
        x = jnp.tile(jnp.arange(256, dtype=jnp.float32)[None, :], (8, 1))
        y = pl.pallas_call(k, out_shape=jax.ShapeDtypeStruct((8, 256), jnp.float32))(x)
        v = float(y[0, 1])
        if v == 0.0:       # jnp.roll semantics: result[j] = x[j - shift]
            _ROLL_SIGN = -1
        elif v == 2.0:     # opposite convention: result[j] = x[j + shift]
            _ROLL_SIGN = 1
        else:
            raise _RollPathUnavailable("unexpected pltpu.roll behaviour")
    return _ROLL_SIGN


def _conv2_3x3_stride1(y1, sc1, sh1, w2_taps, n_imgs, H, W, *, dtype, ipt_pref=None):
    """conv2 (3x3, pad 1, stride 1) + bn2 stats, with bn1+relu fused in."""
    C, M = y1.shape
    hw = H * W
    isz = jnp.dtype(dtype).itemsize
    per_lane = C * (4 * isz + 24)          # streamed blocks + f32 temporaries
    fixed = 2 * 9 * C * C * isz + 4 * C * _LANE * 4
    ipt = _choose_ipt(n_imgs, hw, per_lane, _block_budget() - fixed, ipt_pref)
    tm = ipt * hw
    if tm % _LANE != 0:
        # TODO(synk): support non-128-multiple image tiles in the rolled path.
        raise _RollPathUnavailable("tile is not a multiple of 128 lanes")
    sign = _roll_sign()
    taps = []
    for kh in range(3):
        for kw in range(3):
            dh, dw = kh - 1, kw - 1
            taps.append((dh, dw, (sign * (dh * W + dw)) % tm))
    taps = tuple(taps)
    nc, steps = _split_cores(n_imgs // ipt)
    kern = functools.partial(_conv2_kernel, H=H, W=W, taps=taps, compute_dtype=dtype)
    return pl.pallas_call(
        kern,
        grid=(nc, steps),
        in_specs=[
            pl.BlockSpec((C, tm), lambda c, i, s=steps: (0, c * s + i)),
            pl.BlockSpec((C, 1), lambda c, i: (0, 0)),
            pl.BlockSpec((C, 1), lambda c, i: (0, 0)),
            pl.BlockSpec((9, C, C), lambda c, i: (0, 0, 0)),
        ],
        out_specs=[
            pl.BlockSpec((C, tm), lambda c, i, s=steps: (0, c * s + i)),
            pl.BlockSpec((C, _LANE), lambda c, i: (0, c)),
            pl.BlockSpec((C, _LANE), lambda c, i: (0, c)),
        ],
        out_shape=[
            jax.ShapeDtypeStruct((C, M), dtype),
            jax.ShapeDtypeStruct((C, nc * _LANE), jnp.float32),
            jax.ShapeDtypeStruct((C, nc * _LANE), jnp.float32),
        ],
        compiler_params=_cparams(("parallel", "arbitrary")),
    )(y1, sc1, sh1, w2_taps)


_ROLL_CONV_OK = None


def _conv2_roll_supported():
    """One-time runtime check of the rolled conv2 path vs lax.conv; on any
    failure every stride-1 block silently falls back to the im2col path."""
    global _ROLL_CONV_OK
    if _ROLL_CONV_OK is None:
        try:
            C, N, H, W = 8, 2, 8, 8
            k1, k2, k3, k4 = jax.random.split(jax.random.PRNGKey(123), 4)
            y1 = jax.random.normal(k1, (C, N * H * W), jnp.float32)
            sc = 1.0 + 0.1 * jax.random.normal(k2, (C, 1), jnp.float32)
            sh = 0.1 * jax.random.normal(k3, (C, 1), jnp.float32)
            w2 = jax.random.normal(k4, (C, C, 3, 3), jnp.float32)
            w2_taps = jnp.transpose(w2, (2, 3, 0, 1)).reshape(9, C, C)
            y2, _, _ = _conv2_3x3_stride1(y1, sc, sh, w2_taps, N, H, W,
                                          dtype=jnp.float32)
            out1 = jnp.maximum(y1 * sc + sh, 0.0).reshape(C, N, H, W).transpose(1, 0, 2, 3)
            ref = lax.conv_general_dilated(out1, w2, (1, 1), [(1, 1), (1, 1)],
                                           dimension_numbers=("NCHW", "OIHW", "NCHW"))
            ref = ref.transpose(1, 0, 2, 3).reshape(C, N * H * W)
            _ROLL_CONV_OK = bool(jnp.allclose(y2, ref, rtol=2e-2, atol=2e-2))
        except Exception:
            _ROLL_CONV_OK = False
    return _ROLL_CONV_OK


def _tail_stats(y2, sc2, sh2, w3, xs, ws, n_imgs, hw, *, dtype, ipt_pref=None):
    planes, M = y2.shape
    Cout = w3.shape[0]
    proj = ws is not None
    isz = jnp.dtype(dtype).itemsize
    per_lane = 2 * isz * planes + 8 * planes + 8 * Cout
    fixed = 2 * Cout * planes * isz + 4 * Cout * _LANE * 4
    if proj:
        Cin = xs.shape[0]
        per_lane += 2 * isz * Cin
        fixed += 2 * Cout * Cin * isz + 4 * Cout * _LANE * 4
    ipt = _choose_ipt(n_imgs, hw, per_lane, _block_budget() - fixed, ipt_pref)
    tm = ipt * hw
    nc, steps = _split_cores(n_imgs // ipt)

    in_specs = [
        pl.BlockSpec((planes, tm), lambda c, i, s=steps: (0, c * s + i)),
        pl.BlockSpec((planes, 1), lambda c, i: (0, 0)),
        pl.BlockSpec((planes, 1), lambda c, i: (0, 0)),
        pl.BlockSpec((Cout, planes), lambda c, i: (0, 0)),
    ]
    args = [y2, sc2, sh2, w3]
    if proj:
        in_specs += [
            pl.BlockSpec((xs.shape[0], tm), lambda c, i, s=steps: (0, c * s + i)),
            pl.BlockSpec((Cout, xs.shape[0]), lambda c, i: (0, 0)),
        ]
        args += [xs, ws]
    n_acc = 4 if proj else 2
    out_specs = [pl.BlockSpec((Cout, _LANE), lambda c, i: (0, c)) for _ in range(n_acc)]
    out_shape = [jax.ShapeDtypeStruct((Cout, nc * _LANE), jnp.float32)] * n_acc
    kern = functools.partial(_tail_stats_kernel, proj=proj, compute_dtype=dtype)
    return pl.pallas_call(
        kern,
        grid=(nc, steps),
        in_specs=in_specs,
        out_specs=out_specs,
        out_shape=out_shape,
        compiler_params=_cparams(("parallel", "arbitrary")),
    )(*args)


def _tail_apply(y2, sc2, sh2, w3, sc3, sh3, n_imgs, hw, *, xs=None, ws=None,
                scs=None, shs=None, res=None, dtype, ipt_pref=None):
    planes, M = y2.shape
    Cout = w3.shape[0]
    proj = ws is not None
    isz = jnp.dtype(dtype).itemsize
    per_lane = 2 * isz * planes + 2 * 4 * Cout + 8 * Cout
    fixed = 2 * Cout * planes * isz
    if proj:
        per_lane += 2 * isz * xs.shape[0]
        fixed += 2 * Cout * xs.shape[0] * isz
    else:
        per_lane += 2 * isz * res.shape[0]
    ipt = _choose_ipt(n_imgs, hw, per_lane, _block_budget() - fixed, ipt_pref)
    tm = ipt * hw
    steps = n_imgs // ipt

    in_specs = [
        pl.BlockSpec((planes, tm), lambda i: (0, i)),
        pl.BlockSpec((planes, 1), lambda i: (0, 0)),
        pl.BlockSpec((planes, 1), lambda i: (0, 0)),
        pl.BlockSpec((Cout, planes), lambda i: (0, 0)),
        pl.BlockSpec((Cout, 1), lambda i: (0, 0)),
        pl.BlockSpec((Cout, 1), lambda i: (0, 0)),
    ]
    args = [y2, sc2, sh2, w3, sc3, sh3]
    if proj:
        in_specs += [
            pl.BlockSpec((xs.shape[0], tm), lambda i: (0, i)),
            pl.BlockSpec((Cout, xs.shape[0]), lambda i: (0, 0)),
            pl.BlockSpec((Cout, 1), lambda i: (0, 0)),
            pl.BlockSpec((Cout, 1), lambda i: (0, 0)),
        ]
        args += [xs, ws, scs, shs]
    else:
        in_specs += [pl.BlockSpec((Cout, tm), lambda i: (0, i))]
        args += [res]
    kern = functools.partial(_tail_apply_kernel, proj=proj, compute_dtype=dtype)
    return pl.pallas_call(
        kern,
        grid=(steps,),
        in_specs=in_specs,
        out_specs=pl.BlockSpec((Cout, tm), lambda i: (0, i)),
        out_shape=jax.ShapeDtypeStruct((Cout, M), jnp.float32),
        compiler_params=_cparams(("parallel",)),
    )(*args)


def _fold_bn(gamma, beta, sum_acc, ssq_acc, count):
    """Fold batch-stat BN into per-channel (C, 1) scale/shift, once per stage."""
    s = jnp.sum(sum_acc, axis=-1)
    q = jnp.sum(ssq_acc, axis=-1)
    mean = s / count
    var = jnp.maximum(q / count - mean * mean, 0.0)   # clamp: cancellation can go < 0
    scale = gamma.astype(jnp.float32) * lax.rsqrt(var + BN_EPS)
    shift = beta.astype(jnp.float32) - mean * scale
    return scale.reshape(-1, 1), shift.reshape(-1, 1)


# --------------------------------------------------------------------------
# Forward pass
# --------------------------------------------------------------------------

def bottleneck_forward(x_nchw, p, stride, *, dtype=jnp.bfloat16, ipt_pref=None):
    """Pallas implementation of BottleneckReimpl.forward (training-mode BatchNorm,
    NCHW in / out, float32 result).  `dtype` is the HBM storage / MXU input dtype."""
    x = x_nchw.astype(jnp.float32)
    N, Cin, H, W = x.shape
    planes = p["w1"].shape[0]
    Cout = p["w3"].shape[0]
    Ho = (H + 2 - 3) // stride + 1
    Wo = (W + 2 - 3) // stride + 1
    proj = (stride != 1) or (Cin != Cout)
    M1 = N * H * W
    M2 = N * Ho * Wo

    # TODO(synk): fold this NCHW->(C, N*H*W) transpose + downcast into the conv1
    # kernel via an (N,)-grid index map instead of one fused XLA pass.
    x_t = jnp.transpose(x, (1, 0, 2, 3)).reshape(Cin, M1).astype(dtype)
    w1 = p["w1"][:, :, 0, 0].astype(dtype)
    w3 = p["w3"][:, :, 0, 0].astype(dtype)

    # ---- conv1 (1x1): y1 written once + bn1 stats in the same pass ----------
    y1, s1, q1 = _matmul_stats_y(x_t, w1, N, H * W, dtype=dtype, ipt_pref=ipt_pref)
    sc1, sh1 = _fold_bn(p["g1"], p["b1"], s1, q1, M1)

    # ---- conv2 (3x3, pad 1, stride) + bn2 stats ------------------------------
    y2 = None
    if stride == 1 and _conv2_roll_supported():
        try:
            w2_taps = (jnp.transpose(p["w2"], (2, 3, 0, 1))
                       .reshape(9, planes, planes).astype(dtype))
            y2, s2, q2 = _conv2_3x3_stride1(y1, sc1, sh1, w2_taps, N, H, W,
                                            dtype=dtype, ipt_pref=ipt_pref)
        except _RollPathUnavailable:
            y2 = None
    if y2 is None:
        # Fallback (stride > 1 or rolled path unavailable): bn1+relu apply
        # kernel, then a single bf16 patch matrix consumed once.
        # TODO(synk): in-kernel shifted taps for stride > 1 (column-phase split)
        # so the patch matrix never hits HBM.
        out1 = _bn_apply(y1, sc1, sh1, N, H * W, relu=True, out_dtype=dtype,
                         ipt_pref=ipt_pref)
        o1p = jnp.pad(out1.reshape(planes, N, H, W),
                      ((0, 0), (0, 0), (1, 1), (1, 1)))
        taps = [o1p[:, :, kh:kh + (Ho - 1) * stride + 1:stride,
                    kw:kw + (Wo - 1) * stride + 1:stride]
                for kh in range(3) for kw in range(3)]
        patches = jnp.stack(taps, axis=0).reshape(9 * planes, M2).astype(dtype)
        w2_flat = (jnp.transpose(p["w2"], (0, 2, 3, 1))
                   .reshape(planes, 9 * planes).astype(dtype))
        y2, s2, q2 = _matmul_stats_y(patches, w2_flat, N, Ho * Wo, dtype=dtype,
                                     ipt_pref=ipt_pref)
    sc2, sh2 = _fold_bn(p["g2"], p["b2"], s2, q2, M2)

    # ---- conv3 + bn3 + shortcut + add + relu (out2 never materialized) ------
    if stride == 1:
        xs_t = x_t
    else:
        xs_t = (jnp.transpose(x[:, :, ::stride, ::stride], (1, 0, 2, 3))
                .reshape(Cin, M2).astype(dtype))

    if proj:
        ws = p["ws"][:, :, 0, 0].astype(dtype)
        s3, q3, ss, qs = _tail_stats(y2, sc2, sh2, w3, xs_t, ws, N, Ho * Wo,
                                     dtype=dtype, ipt_pref=ipt_pref)
        sc3, sh3 = _fold_bn(p["g3"], p["b3"], s3, q3, M2)
        scs, shs = _fold_bn(p["gs"], p["bs"], ss, qs, M2)
        out_t = _tail_apply(y2, sc2, sh2, w3, sc3, sh3, N, Ho * Wo, xs=xs_t, ws=ws,
                            scs=scs, shs=shs, dtype=dtype, ipt_pref=ipt_pref)
    else:
        s3, q3 = _tail_stats(y2, sc2, sh2, w3, None, None, N, Ho * Wo,
                             dtype=dtype, ipt_pref=ipt_pref)
        sc3, sh3 = _fold_bn(p["g3"], p["b3"], s3, q3, M2)
        out_t = _tail_apply(y2, sc2, sh2, w3, sc3, sh3, N, Ho * Wo, res=xs_t,
                            dtype=dtype, ipt_pref=ipt_pref)

    # TODO(synk): emit NCHW directly from the tail kernel to avoid this transpose.
    return out_t.reshape(Cout, N, Ho, Wo).transpose(1, 0, 2, 3)


# --------------------------------------------------------------------------
# Pure-JAX reference + test harness
# --------------------------------------------------------------------------

def ref_forward(x, p, stride):
    def conv(a, w, s, pad):
        return lax.conv_general_dilated(a, w, (s, s), pad,
                                        dimension_numbers=("NCHW", "OIHW", "NCHW"))

    def bn(y, g, b):
        mean = y.mean(axis=(0, 2, 3), keepdims=True)
        var = jnp.square(y - mean).mean(axis=(0, 2, 3), keepdims=True)
        return ((y - mean) * lax.rsqrt(var + BN_EPS) * g.reshape(1, -1, 1, 1)
                + b.reshape(1, -1, 1, 1))

    Cin = x.shape[1]
    Cout = p["w3"].shape[0]
    out = jax.nn.relu(bn(conv(x, p["w1"], 1, "VALID"), p["g1"], p["b1"]))
    out = jax.nn.relu(bn(conv(out, p["w2"], stride, [(1, 1), (1, 1)]),
                         p["g2"], p["b2"]))
    out = bn(conv(out, p["w3"], 1, "VALID"), p["g3"], p["b3"])
    if stride != 1 or Cin != Cout:
        sc = bn(conv(x, p["ws"], stride, "VALID"), p["gs"], p["bs"])
    else:
        sc = x
    return jax.nn.relu(out + sc)


def make_params(key, in_planes, planes, out_planes):
    ks = jax.random.split(key, 12)
    return {
        "w1": 0.2 * jax.random.normal(ks[0], (planes, in_planes, 1, 1), jnp.float32),
        "w2": 0.2 * jax.random.normal(ks[1], (planes, planes, 3, 3), jnp.float32),
        "w3": 0.2 * jax.random.normal(ks[2], (out_planes, planes, 1, 1), jnp.float32),
        "ws": 0.2 * jax.random.normal(ks[3], (out_planes, in_planes, 1, 1), jnp.float32),
        "g1": 1.0 + 0.1 * jax.random.normal(ks[4], (planes,), jnp.float32),
        "b1": 0.1 * jax.random.normal(ks[5], (planes,), jnp.float32),
        "g2": 1.0 + 0.1 * jax.random.normal(ks[6], (planes,), jnp.float32),
        "b2": 0.1 * jax.random.normal(ks[7], (planes,), jnp.float32),
        "g3": 1.0 + 0.1 * jax.random.normal(ks[8], (out_planes,), jnp.float32),
        "b3": 0.1 * jax.random.normal(ks[9], (out_planes,), jnp.float32),
        "gs": 1.0 + 0.1 * jax.random.normal(ks[10], (out_planes,), jnp.float32),
        "bs": 0.1 * jax.random.normal(ks[11], (out_planes,), jnp.float32),
    }


if __name__ == "__main__":
    configs = [
        # (batch, in_planes, planes, out_planes, H, W, stride)
        (2, 8, 4, 16, 16, 16, 2),    # projected shortcut (stride 2, Cin != Cout)
        (2, 16, 4, 16, 16, 16, 1),   # identity shortcut -> in-kernel 9-tap conv2
        (3, 8, 4, 16, 14, 10, 1),    # odd batch / ragged spatial (no tile asserts)
    ]
    key = jax.random.PRNGKey(0)
    for idx, (batch, cin, planes, cout, H, W, stride) in enumerate(configs):
        kp, kx, key = jax.random.split(key, 3)
        p = make_params(kp, cin, planes, cout)
        x = jax.random.normal(kx, (batch, cin, H, W), jnp.float32)

        ref = jax.block_until_ready(ref_forward(x, p, stride))

        # Exact-semantics check: f32 storage/compute, one image per tile so the
        # multi-step / dual-core stats accumulation is exercised.
        out_f32 = jax.block_until_ready(
            bottleneck_forward(x, p, stride, dtype=jnp.float32, ipt_pref=1))
        assert out_f32.shape == ref.shape
        np.testing.assert_allclose(np.asarray(out_f32), np.asarray(ref),
                                   rtol=1e-2, atol=1e-2)

        # Fast path: bf16 HBM storage / MXU inputs, f32 accumulation + BN math.
        if idx < 2:
            out_bf16 = jax.block_until_ready(bottleneck_forward(x, p, stride))
            np.testing.assert_allclose(np.asarray(out_bf16), np.asarray(ref),
                                       rtol=1e-1, atol=1e-1)

    print("KERNEL_OK")
</pallas_src>

<mosaic_0001>
module attributes {stable_mosaic.version = 11 : i64} {
  func.func @_mm_stats_y_kernel(%arg0: i32, %arg1: i32, %arg2: memref<8x256xf32, #tpu.memory_space<vmem>>, %arg3: memref<4x8xf32, #tpu.memory_space<vmem>>, %arg4: memref<4x256xf32, #tpu.memory_space<vmem>>, %arg5: memref<4x128xf32, #tpu.memory_space<vmem>>, %arg6: memref<4x128xf32, #tpu.memory_space<vmem>>) attributes {dimension_semantics = [#tpu.dimension_semantics<parallel>, #tpu.dimension_semantics<arbitrary>], iteration_bounds = array<i64: 2, 1>, scalar_prefetch = 0 : i64, scratch_operands = 0 : i64, tpu.core_type = #tpu.core_type<tc>, window_params = [{transform_indices = @transform_0, window_bounds = array<i64: 8, 256>}, {pipeline_mode = #tpu.pipeline_mode<synchronous>, transform_indices = @transform_1, window_bounds = array<i64: 4, 8>}, {transform_indices = @transform_2, window_bounds = array<i64: 4, 256>}, {transform_indices = @transform_3, window_bounds = array<i64: 4, 128>}, {transform_indices = @transform_4, window_bounds = array<i64: 4, 128>}]} {
    %c0_i32 = arith.constant 0 : i32
    %0 = arith.cmpi eq, %arg1, %c0_i32 : i32
    %1 = arith.extui %0 : i1 to i32
    %c0_i32_0 = arith.constant 0 : i32
    %2 = arith.cmpi ne, %1, %c0_i32_0 : i32
    scf.if %2 {
      %cst_14 = arith.constant 0.000000e+00 : f32
      %19 = vector.broadcast %cst_14 : f32 to vector<4x128xf32>
      %c0_15 = arith.constant 0 : index
      %c0_16 = arith.constant 0 : index
      %20 = vector.load %arg5[%c0_15, %c0_16] : memref<4x128xf32, #tpu.memory_space<vmem>>, vector<4x128xf32>
      tpu.vector_store %arg5[%c0_15, %c0_16], %19 {strides = array<i32>} : memref<4x128xf32, #tpu.memory_space<vmem>>, vector<4x128xf32>,
      %cst_17 = arith.constant 0.000000e+00 : f32
      %21 = vector.broadcast %cst_17 : f32 to vector<4x128xf32>
      %c0_18 = arith.constant 0 : index
      %c0_19 = arith.constant 0 : index
      %22 = vector.load %arg6[%c0_18, %c0_19] : memref<4x128xf32, #tpu.memory_space<vmem>>, vector<4x128xf32>
      tpu.vector_store %arg6[%c0_18, %c0_19], %21 {strides = array<i32>} : memref<4x128xf32, #tpu.memory_space<vmem>>, vector<4x128xf32>,
    } else {
    }
    %c0 = arith.constant 0 : index
    %c0_1 = arith.constant 0 : index
    %3 = vector.load %arg3[%c0, %c0_1] : memref<4x8xf32, #tpu.memory_space<vmem>>, vector<4x8xf32>
    %c0_2 = arith.constant 0 : index
    %c0_3 = arith.constant 0 : index
    %4 = vector.load %arg2[%c0_2, %c0_3] : memref<8x256xf32, #tpu.memory_space<vmem>>, vector<8x256xf32>
    %cst = arith.constant dense<0.000000e+00> : vector<4x256xf32>
    %5 = tpu.matmul %3, %4, %cst {dimension_numbers = #tpu.dot_dimension_numbers<[1], [0], [0], [1], [0, 0, 1, 1], [], []>} : vector<4x8xf32>, vector<8x256xf32>, vector<4x256xf32> -> vector<4x256xf32>
    %c0_4 = arith.constant 0 : index
    %c0_5 = arith.constant 0 : index
    %6 = vector.load %arg4[%c0_4, %c0_5] : memref<4x256xf32, #tpu.memory_space<vmem>>, vector<4x256xf32>
    tpu.vector_store %arg4[%c0_4, %c0_5], %5 {strides = array<i32>} : memref<4x256xf32, #tpu.memory_space<vmem>>, vector<4x256xf32>,
    %7 = vector.extract_strided_slice %5 {offsets = [0, 0], sizes = [4, 128], strides = [1, 1]} : vector<4x256xf32> to vector<4x128xf32>
    %8 = arith.mulf %7, %7 : vector<4x128xf32>
    %9 = vector.extract_strided_slice %5 {offsets = [0, 128], sizes = [4, 128], strides = [1, 1]} : vector<4x256xf32> to vector<4x128xf32>
    %10 = arith.addf %7, %9 : vector<4x128xf32>
    %11 = arith.mulf %9, %9 : vector<4x128xf32>
    %12 = arith.addf %8, %11 : vector<4x128xf32>
    %c0_6 = arith.constant 0 : index
    %c0_7 = arith.constant 0 : index
    %13 = vector.load %arg5[%c0_6, %c0_7] : memref<4x128xf32, #tpu.memory_space<vmem>>, vector<4x128xf32>
    %14 = arith.addf %13, %10 : vector<4x128xf32>
    %c0_8 = arith.constant 0 : index
    %c0_9 = arith.constant 0 : index
    %15 = vector.load %arg5[%c0_8, %c0_9] : memref<4x128xf32, #tpu.memory_space<vmem>>, vector<4x128xf32>
    tpu.vector_store %arg5[%c0_8, %c0_9], %14 {strides = array<i32>} : memref<4x128xf32, #tpu.memory_space<vmem>>, vector<4x128xf32>,
    %c0_10 = arith.constant 0 : index
    %c0_11 = arith.constant 0 : index
    %16 = vector.load %arg6[%c0_10, %c0_11] : memref<4x128xf32, #tpu.memory_space<vmem>>, vector<4x128xf32>
    %17 = arith.addf %16, %12 : vector<4x128xf32>
    %c0_12 = arith.constant 0 : index
    %c0_13 = arith.constant 0 : index
    %18 = vector.load %arg6[%c0_12, %c0_13] : memref<4x128xf32, #tpu.memory_space<vmem>>, vector<4x128xf32>
    tpu.vector_store %arg6[%c0_12, %c0_13], %17 {strides = array<i32>} : memref<4x128xf32, #tpu.memory_space<vmem>>, vector<4x128xf32>,
    return
  }
  func.func @transform_0(%arg0: i32, %arg1: i32) -> (i32, i32) {
    %c1_i32 = arith.constant 1 : i32
    %0 = arith.muli %arg0, %c1_i32 : i32
    %1 = arith.addi %0, %arg1 : i32
    %c0_i32 = arith.constant 0 : i32
    %c0_i32_0 = arith.constant 0 : i32
    return %c0_i32, %1 : i32, i32
  }
  func.func @transform_1(%arg0: i32, %arg1: i32) -> (i32, i32) {
    %c0_i32 = arith.constant 0 : i32
    %c0_i32_0 = arith.constant 0 : i32
    %c0_i32_1 = arith.constant 0 : i32
    return %c0_i32, %c0_i32_0 : i32, i32
  }
  func.func @transform_2(%arg0: i32, %arg1: i32) -> (i32, i32) {
    %c1_i32 = arith.constant 1 : i32
    %0 = arith.muli %arg0, %c1_i32 : i32
    %1 = arith.addi %0, %arg1 : i32
    %c0_i32 = arith.constant 0 : i32
    %c0_i32_0 = arith.constant 0 : i32
    return %c0_i32, %1 : i32, i32
  }
  func.func @transform_3(%arg0: i32, %arg1: i32) -> (i32, i32) {
    %c0_i32 = arith.constant 0 : i32
    %c0_i32_0 = arith.constant 0 : i32
    return %c0_i32, %arg0 : i32, i32
  }
  func.func @transform_4(%arg0: i32, %arg1: i32) -> (i32, i32) {
    %c0_i32 = arith.constant 0 : i32
    %c0_i32_0 = arith.constant 0 : i32
    return %c0_i32, %arg0 : i32, i32
  }
}

</mosaic_0001>

<llo_original>
// kernel: tpu_custom_call.1
$region0: #{tpu_custom_call.1}
  #allocation0 [shape = 'u32[]', space=smem, size = 0x4, offset = 0x4, fixed_abs, tag = 'smem constant byte address 0x4 - core index']
  #allocation1 [shape = 'u32[144,128]{1,0:T(1,128)}', space=vmem, size = 0x12000, scoped, tag = 'internal scratch']
  %s0 = inlined_call_operand.hbm [shape: f32[8,512], index: 0, kind: input, shape index: {}]
  %s1 = inlined_call_operand.hbm [shape: f32[4,8], index: 1, kind: input, shape index: {}]
  %s2 = inlined_call_operand.hbm [shape: f32[4,512], index: 2, kind: output, shape index: {0}]
  %s3 = inlined_call_operand.hbm [shape: f32[4,256], index: 3, kind: output, shape index: {1}]
  %s4 = inlined_call_operand.hbm [shape: f32[4,256], index: 4, kind: output, shape index: {2}]
  %5 = xla_tuple %s2, %s3, %s4
  %s6 = sld [smem:[#allocation0]]
  $region69: #{tpu_custom_call.1} parent=0
    _
  %s8 = ssub.s32 1, %s6
  %s9 = scalar_select 0, %s8, %s6
  $region1: #{tpu_custom_call.1} parent=0
    #allocation2 [shape = 'u8[16384]{0}', space=vmem, size = 0x4000, scoped, tag = 'input window, operand 0']
    #allocation3 [shape = 's32[2]{0}', space=sflag, size = 0x8, scoped, tag = 'scoped memory for tpu_custom_call.1']
    #allocation4 [shape = 's32[2]{0}', space=sflag, size = 0x8, scoped, tag = 'scoped memory for tpu_custom_call.1']
    #allocation5 [shape = 'u8[2048]{0}', space=vmem, size = 0x800, scoped, tag = 'input window, operand 1, single buffered']
    #allocation6 [shape = 's32[1]{0}', space=sflag, size = 0x4, scoped, tag = 'scoped memory for tpu_custom_call.1']
    #allocation7 [shape = 'u8[8192]{0}', space=vmem, size = 0x2000, scoped, tag = 'output window, operand 0']
    #allocation8 [shape = 'u8[4096]{0}', space=vmem, size = 0x1000, scoped, tag = 'output window, operand 1']
    #allocation9 [shape = 's32[2]{0}', space=sflag, size = 0x8, scoped, tag = 'scoped memory for tpu_custom_call.1']
    #allocation10 [shape = 'u8[4096]{0}', space=vmem, size = 0x1000, scoped, tag = 'output window, operand 2']
    %10 = vsyncpa [#allocation3], 0
    %s11 = scalar_lea.sflag [#allocation3], 1
    %12 = vsyncpa %s11, 0
    %13 = vsyncpa [#allocation6], 0
    %14 = vsyncpa [#allocation4], 0
    %s15 = scalar_lea.sflag [#allocation4], 1
    %16 = vsyncpa %s15, 0
    %17 = vsyncpa [#allocation9], 0
    %s18 = scalar_lea.sflag [#allocation9], 1
    %19 = vsyncpa %s18, 0
    loop: start=0, step=1, limit=4
    $region2: #{tpu_custom_call.1} parent=1 // loop_pre_header
      _
    $region3: #{tpu_custom_call.1} parent=1 // loop_header
      %s21 = sphi 0, %s25
      %p22 = scmp.ge.s32.totalorder %s21, 4
      %s28 = sphi 0, %s40
      %s29 = sphi 0, %s36
      %s30 = sphi 0, %s28
      %s31 = sphi 0, %s29
      %s32 = sphi 0, %s30
      %s33 = sphi 0, %s31
      %s45 = sphi 0, %s47
      %s48 = sphi 0, %s45
      %s49 = sphi 0, %s48
      %s65 = sphi 0, %s49
      %s69 = sphi 0, %s69
      %s71 = sphi 0, %s69
      %s72 = sphi 0, %s71
      %s86 = sphi 0, %s72
      %s94 = sphi 0, %s96
      %s97 = sphi 0, %s94
      %s98 = sphi 0, %s97
      %s114 = sphi 0, %s98
      %s120 = sphi 0, %s122
      %s123 = sphi 0, %s120
      %s124 = sphi 0, %s123
      %s140 = sphi 0, %s124
      %s146 = sphi 0, %s148
      %s149 = sphi 0, %s146
      %s150 = sphi 0, %s149
      %s166 = sphi 0, %s150
    $region4: #{tpu_custom_call.1} parent=1 // loop_header_branch
      %24 = sbr.rel (%p22) target = $region8
    $region5: #{tpu_custom_call.1} parent=1 // loop_body
      %s26 = ssub.s32 %s21, 1
      %s27 = ssub.s32 %s21, 2
      %s34 = sadd.s32 1, %s29
      %p35 = scmp.ge.s32.totalorder %s34, 1
      %s36 = scalar_select %p35, 0, %s34
      %s37 = sadd.s32 1, %s28
      %s38 = scalar_select %p35, %s37, %s28
      %p39 = scmp.ge.s32.totalorder %s38, 2
      %s40 = scalar_select %p39, 0, %s38
      %s41 = sadd.s32 %s28, %s29
      %s42 = sadd.s32 %s40, %s36
      %s43 = ssub.s32 %s41, %s42
      %p44 = scmp.eq.s32.totalorder %s43, 0
      %s46 = sadd.s32 %s45, 1
      %s47 = scalar_select %p44, %s45, %s46
      %p50 = pneg %p44
      %p51 = scmp.eq.s32.totalorder %s21, 1
      %p52 = por %p50, %p51
      %p53 = scmp.ne.s32.totalorder %s45, %s48
      %p54 = scmp.eq.s32.totalorder %s21, 0
      %p55 = por %p53, %p54
      %p56 = scmp.ne.s32.totalorder %s45, %s48
      %p57 = scmp.eq.s32.totalorder %s26, 1
      %p58 = por %p56, %p57
      %p59 = scmp.ne.s32.totalorder %s48, %s49
      %p60 = scmp.eq.s32.totalorder %s26, 0
      %p61 = por %p59, %p60
      %p62 = scmp.ne.s32.totalorder %s48, %s49
      %p63 = scmp.eq.s32.totalorder %s27, 1
      %p64 = por %p62, %p63
      %p66 = scmp.ne.s32.totalorder %s49, %s65
      %p67 = scmp.eq.s32.totalorder %s27, 0
      %p68 = por %p66, %p67
      %s70 = sadd.s32 %s69, 1
      %p73 = scmp.eq.s32.totalorder %s21, 1
      %p74 = scmp.ne.s32.totalorder %s69, %s71
      %p75 = scmp.eq.s32.totalorder %s21, 0
      %p76 = por %p74, %p75
      %p77 = scmp.ne.s32.totalorder %s69, %s71
      %p78 = scmp.eq.s32.totalorder %s26, 1
      %p79 = por %p77, %p78
      %p80 = scmp.ne.s32.totalorder %s71, %s72
      %p81 = scmp.eq.s32.totalorder %s26, 0
      %p82 = por %p80, %p81
      %p83 = scmp.ne.s32.totalorder %s71, %s72
      %p84 = scmp.eq.s32.totalorder %s27, 1
      %p85 = por %p83, %p84
      %p87 = scmp.ne.s32.totalorder %s72, %s86
      %p88 = scmp.eq.s32.totalorder %s27, 0
      %p89 = por %p87, %p88
      %s90 = sadd.s32 %s28, %s29
      %s91 = sadd.s32 %s40, %s36
      %s92 = ssub.s32 %s90, %s91
      %p93 = scmp.eq.s32.totalorder %s92, 0
      %s95 = sadd.s32 %s94, 1
      %s96 = scalar_select %p93, %s94, %s95
      %p99 = pneg %p93
      %p100 = scmp.eq.s32.totalorder %s21, 1
      %p101 = por %p99, %p100
      %p102 = scmp.ne.s32.totalorder %s94, %s97
      %p103 = scmp.eq.s32.totalorder %s21, 0
      %p104 = por %p102, %p103
      %p105 = scmp.ne.s32.totalorder %s94, %s97
      %p106 = scmp.eq.s32.totalorder %s26, 1
      %p107 = por %p105, %p106
      %p108 = scmp.ne.s32.totalorder %s97, %s98
      %p109 = scmp.eq.s32.totalorder %s26, 0
      %p110 = por %p108, %p109
      %p111 = scmp.ne.s32.totalorder %s97, %s98
      %p112 = scmp.eq.s32.totalorder %s27, 1
      %p113 = por %p111, %p112
      %p115 = scmp.ne.s32.totalorder %s98, %s114
      %p116 = scmp.eq.s32.totalorder %s27, 0
      %p117 = por %p115, %p116
      %s118 = ssub.s32 %s28, %s40
      %p119 = scmp.eq.s32.totalorder %s118, 0
      %s121 = sadd.s32 %s120, 1
      %s122 = scalar_select %p119, %s120, %s121
      %p125 = pneg %p119
      %p126 = scmp.eq.s32.totalorder %s21, 1
      %p127 = por %p125, %p126
      %p128 = scmp.ne.s32.totalorder %s120, %s123
      %p129 = scmp.eq.s32.totalorder %s21, 0
      %p130 = por %p128, %p129
      %p131 = scmp.ne.s32.totalorder %s120, %s123
      %p132 = scmp.eq.s32.totalorder %s26, 1
      %p133 = por %p131, %p132
      %p134 = scmp.ne.s32.totalorder %s123, %s124
      %p135 = scmp.eq.s32.totalorder %s26, 0
      %p136 = por %p134, %p135
      %p137 = scmp.ne.s32.totalorder %s123, %s124
      %p138 = scmp.eq.s32.totalorder %s27, 1
      %p139 = por %p137, %p138
      %p141 = scmp.ne.s32.totalorder %s124, %s140
      %p142 = scmp.eq.s32.totalorder %s27, 0
      %p143 = por %p141, %p142
      %s144 = ssub.s32 %s28, %s40
      %p145 = scmp.eq.s32.totalorder %s144, 0
      %s147 = sadd.s32 %s146, 1
      %s148 = scalar_select %p145, %s146, %s147
      %p151 = pneg %p145
      %p152 = scmp.eq.s32.totalorder %s21, 1
      %p153 = por %p151, %p152
      %p154 = scmp.ne.s32.totalorder %s146, %s149
      %p155 = scmp.eq.s32.totalorder %s21, 0
      %p156 = por %p154, %p155
      %p157 = scmp.ne.s32.totalorder %s146, %s149
      %p158 = scmp.eq.s32.totalorder %s26, 1
      %p159 = por %p157, %p158
      %p160 = scmp.ne.s32.totalorder %s149, %s150
      %p161 = scmp.eq.s32.totalorder %s26, 0
      %p162 = por %p160, %p161
      %p163 = scmp.ne.s32.totalorder %s149, %s150
      %p164 = scmp.eq.s32.totalorder %s27, 1
      %p165 = por %p163, %p164
      %p167 = scmp.ne.s32.totalorder %s150, %s166
      %p168 = scmp.eq.s32.totalorder %s27, 0
      %p169 = por %p167, %p168
      %p170 = scmp.le.s32.totalorder 1, %s21
      %p171 = scmp.lt.s32.totalorder %s21, 3
      %p172 = pnand %p170, %p171
      %p173 = pneg %p172
      // Predicated region
      $region9: #{tpu_custom_call.1} parent=5 // pred_check
        _
      $region10: #{tpu_custom_call.1} parent=5 // pred_check_branch
        %175 = sbr.rel (%p172) target = $region12
      $region11: #{tpu_custom_call.1} parent=5 // pred_region
        %s176 = ssub.s32 %s21, 1
        // Predicated region
        $region13: #{tpu_custom_call.1} parent=11 // pred_check
          %p177 = pneg %p82
        $region14: #{tpu_custom_call.1} parent=11 // pred_check_branch
          %179 = sbr.rel (%p177) target = $region16
        $region15: #{tpu_custom_call.1} parent=11 // pred_region
          %s181 = ssub.s32 64, 64
          %182 = vsyncadd [#allocation6], %s181
          %s184 = sshll.u32 [#allocation5], 4
          %s185 = int_to_ptr.vmem [resolvable:$true] %s184
          %187 = dma.hbm_to_vmem [thread:$0]  %s1, 64, %s185, [#allocation6]
        $region16: #{tpu_custom_call.1} parent=11 // pred_fallthru
          _
      $region12: #{tpu_custom_call.1} parent=5 // pred_fallthru
        _
      %p188 = scmp.lt.s32.totalorder %s21, 2
      // Predicated region
      $region17: #{tpu_custom_call.1} parent=5 // pred_check
        %p189 = pneg %p188
      $region18: #{tpu_custom_call.1} parent=5 // pred_check_branch
        %191 = sbr.rel (%p189) target = $region20
      $region19: #{tpu_custom_call.1} parent=5 // pred_region
        // Predicated region
        $region21: #{tpu_custom_call.1} parent=19 // pred_check
          %p192 = pneg %p55
        $region22: #{tpu_custom_call.1} parent=19 // pred_check_branch
          %194 = sbr.rel (%p192) target = $region24
        $region23: #{tpu_custom_call.1} parent=19 // pred_region
          %s195 = sand.u32 %s45, 1
          %s196 = scalar_lea.sflag [#allocation3], %s195
          %s197 = sand.u32 %s45, 1
          %s198 = smul.addr %s197, 16
          %s199 = scalar_lea.vmem [#allocation2], %s198
          %s200 = sadd.s32 %s28, %s29
          %s201 = smul.u32 2, %s200
          %s203 = ssub.s32 256, 256
          %204 = vsyncadd %s196, %s203
          %s205 = smul.addr %s201, 128
          %s206 = scalar_lea.hbm %s0, %s205
          %s208 = sshll.u32 %s199, 4
          %s209 = int_to_ptr.vmem [resolvable:$true] %s208
          %211 = dma.hbm_to_vmem [thread:$0]  %s206, 256, %s209, %s196
        $region24: #{tpu_custom_call.1} parent=19 // pred_fallthru
          _
      $region20: #{tpu_custom_call.1} parent=5 // pred_fallthru
        _
      %p212 = scmp.le.s32.totalorder 1, %s21
      %p213 = scmp.lt.s32.totalorder %s21, 3
      %p214 = pnand %p212, %p213
      %p215 = pneg %p214
      // Predicated region
      $region25: #{tpu_custom_call.1} parent=5 // pred_check
        _
      $region26: #{tpu_custom_call.1} parent=5 // pred_check_branch
        %217 = sbr.rel (%p214) target = $region28
      $region27: #{tpu_custom_call.1} parent=5 // pred_region
        %s218 = ssub.s32 %s21, 1
        %s219 = sand.u32 %s48, 1
        %s220 = scalar_lea.sflag [#allocation3], %s219
        %s221 = sand.u32 %s48, 1
        %s222 = smul.addr %s221, 16
        %s223 = scalar_lea.vmem [#allocation2], %s222
        // Predicated region
        $region29: #{tpu_custom_call.1} parent=27 // pred_check
          %p224 = pneg %p61
        $region30: #{tpu_custom_call.1} parent=27 // pred_check_branch
          %226 = sbr.rel (%p224) target = $region32
        $region31: #{tpu_custom_call.1} parent=27 // pred_region
          %227 = dma.done %s220, 256
        $region32: #{tpu_custom_call.1} parent=27 // pred_fallthru
          _
        // Predicated region
        $region33: #{tpu_custom_call.1} parent=27 // pred_check
          %p228 = pneg %p82
        $region34: #{tpu_custom_call.1} parent=27 // pred_check_branch
          %230 = sbr.rel (%p228) target = $region36
        $region35: #{tpu_custom_call.1} parent=27 // pred_region
          %231 = dma.done [#allocation6], 64
        $region36: #{tpu_custom_call.1} parent=27 // pred_fallthru
          _
        %s232 = sand.u32 %s48, 1
        %s233 = scalar_lea.sflag [#allocation3], %s232
        %s234 = sand.u32 %s48, 1
        %s235 = smul.addr %s234, 16
        %s236 = scalar_lea.vmem [#allocation2], %s235
        %p237 = pneg %p61
        %p238 = pneg %p58
        %p239 = pneg %p82
        %p240 = pneg %p79
        %p241 = pneg %p110
        %p242 = pneg %p107
        %s243 = sand.u32 %s97, 1
        %s244 = scalar_lea.sflag [#allocation4], %s243
        %s245 = sand.u32 %s97, 1
        %s246 = smul.addr %s245, 8
        %s247 = scalar_lea.vmem [#allocation7], %s246
        %p248 = pneg %p136
        %p249 = pneg %p133
        %s250 = sand.u32 %s26, 1
        %s251 = scalar_lea.sflag [#allocation9], %s250
        %s252 = sand.u32 %s123, 1
        %s253 = smul.addr %s252, 4
        %s254 = scalar_lea.vmem [#allocation8], %s253
        %p255 = pneg %p162
        %p256 = pneg %p159
        %s257 = sand.u32 %s26, 1
        %s258 = scalar_lea.sflag [#allocation9], %s257
        %s259 = sand.u32 %s149, 1
        %s260 = smul.addr %s259, 4
        %s261 = scalar_lea.vmem [#allocation10], %s260
        %s262 = sadd.s32 %s30, %s31
        %s263 = smul.u32 2, %s262
        %s264 = sadd.s32 %s30, %s31
        %s265 = smul.u32 2, %s264
        %p266 = scmp.eq.s32.totalorder %s31, 0
        // Predicated region
        $region37: #{tpu_custom_call.1} parent=27 // pred_check
          %p267 = pneg %p266
        $region38: #{tpu_custom_call.1} parent=27 // pred_check_branch
          %269 = sbr.rel (%p267) target = $region40
        $region39: #{tpu_custom_call.1} parent=27 // pred_region
          %270 = vst [vmem:[%s254] sm:$0xf] 0.0
          %271 = vst [vmem:[%s261] sm:$0xf] 0.0
        $region40: #{tpu_custom_call.1} parent=27 // pred_fallthru
          _
        %v272 = vld [vmem:[#allocation5] sm:$0xf]
        %v273 = vld [vmem:[%s223] sm:$0xff]
        %v274 = vld [vmem:[%s223 + $0x8] sm:$0xff]
        %vm275 = vcmask 64512
        %v277 = vsel %vm275, %v272, 0
        %279 = vmatprep.subr.mxu0 0.0
        %280 = vmatpush1.msra.mxu0 0.0
        %281 = vmatprep.subr.mxu0 0.0
        %282 = vmatpush1.msra.mxu0 0.0
        %283 = vmatprep.subr.mxu0 0.0
        %284 = vmatpush1.msra.mxu0 0.0
        %285 = vmatprep.subr.mxu0 0.0
        %286 = vmatpush1.msra.mxu0 0.0
        %287 = vmatprep.subr.mxu0 0.0
        %288 = vmatpush1.msra.mxu0 0.0
        %289 = vmatprep.subr.mxu0 0.0
        %290 = vmatpush1.msra.mxu0 0.0
        %291 = vmatprep.subr.mxu0 0.0
        %292 = vmatpush1.msra.mxu0 0.0
        %293 = vmatprep.subr.mxu0 0.0
        %294 = vmatpush1.msra.mxu0 0.0
        %295 = vmatprep.subr.mxu0 0.0
        %296 = vmatpush1.msra.mxu0 0.0
        %297 = vmatprep.subr.mxu0 0.0
        %298 = vmatpush1.msra.mxu0 0.0
        %299 = vmatprep.subr.mxu0 0.0
        %300 = vmatpush1.msra.mxu0 0.0
        %301 = vmatprep.subr.mxu0 0.0
        %302 = vmatpush1.msra.mxu0 0.0
        %303 = vmatprep.subr.mxu0 0.0
        %304 = vmatpush1.msra.mxu0 0.0
        %305 = vmatprep.subr.mxu0 0.0
        %306 = vmatpush1.msra.mxu0 0.0
        %307 = vmatprep.subr.mxu0 0.0
        %308 = vmatpush1.msra.mxu0 0.0
        %309 = vmatprep.subr.mxu0 %v274
        %310 = vmatpush1.msra.mxu0 %v273
        %311 = vmatprep.subr.mxu0 0.0
        %312 = vmatpush2.msra.mxu0 0.0
        %313 = vmatprep.subr.mxu0 0.0
        %314 = vmatpush2.msra.mxu0 0.0
        %315 = vmatprep.subr.mxu0 0.0
        %316 = vmatpush2.msra.mxu0 0.0
        %317 = vmatprep.subr.mxu0 0.0
        %318 = vmatpush2.msra.mxu0 0.0
        %319 = vmatprep.subr.mxu0 0.0
        %320 = vmatpush2.msra.mxu0 0.0
        %321 = vmatprep.subr.mxu0 0.0
        %322 = vmatpush2.msra.mxu0 0.0
        %323 = vmatprep.subr.mxu0 0.0
        %324 = vmatpush2.msra.mxu0 0.0
        %325 = vmatprep.subr.mxu0 0.0
        %326 = vmatpush2.msra.mxu0 0.0
        %327 = vmatprep.subr.mxu0 0.0
        %328 = vmatpush2.msra.mxu0 0.0
        %329 = vmatprep.subr.mxu0 0.0
        %330 = vmatpush2.msra.mxu0 0.0
        %331 = vmatprep.subr.mxu0 0.0
        %332 = vmatpush2.msra.mxu0 0.0
        %333 = vmatprep.subr.mxu0 0.0
        %334 = vmatpush2.msra.mxu0 0.0
        %335 = vmatprep.subr.mxu0 0.0
        %336 = vmatpush2.msra.mxu0 0.0
        %337 = vmatprep.subr.mxu0 0.0
        %338 = vmatpush2.msra.mxu0 0.0
        %339 = vmatprep.subr.mxu0 0.0
        %340 = vmatpush2.msra.mxu0 0.0
        %341 = vmatprep.subr.mxu0 0.0
        %342 = vmatpush2.msra.mxu0 0.0
        %343 = vmatprep.mubr.f32.mxu0 0.0
        %344 = vmatmul.mubr.f32.gmra.mxu0 %v277
        %v345 = vpop.f32.mrf.mxu0
        %v346 = vadd.f32 0.0, %v345
        %v347 = vpop.f32.mrf.mxu0
        %v348 = vadd.f32 0.0, %v347
        %349 = vdwg.mxu0
        %v352 = vcombine.low %v346, %v348
        %354 = vst [vmem:[%s247] sm:$0xff] %v352
        %v355 = vmul.f32 %v346, %v346
        %v356 = vadd.f32 %v346, %v348
        %v357 = vmul.f32 %v348, %v348
        %v358 = vadd.f32 %v355, %v357
        %v359 = vld [vmem:[%s254] sm:$0xf]
        %v360 = vadd.f32 %v359, %v356
        %361 = vst [vmem:[%s254] sm:$0xf] %v360
        %v362 = vld [vmem:[%s261] sm:$0xf]
        %v363 = vadd.f32 %v362, %v358
        %364 = vst [vmem:[%s261] sm:$0xf] %v363
        %s365 = sand.u32 %s97, 1
        %s366 = scalar_lea.sflag [#allocation4], %s365
        %s367 = sand.u32 %s97, 1
        %s368 = smul.addr %s367, 8
        %s369 = scalar_lea.vmem [#allocation7], %s368
        %s370 = sand.u32 %s26, 1
        %s371 = scalar_lea.sflag [#allocation9], %s370
        %s372 = sand.u32 %s123, 1
        %s373 = smul.addr %s372, 4
        %s374 = scalar_lea.vmem [#allocation8], %s373
        %s375 = sand.u32 %s26, 1
        %s376 = scalar_lea.sflag [#allocation9], %s375
        %s377 = sand.u32 %s149, 1
        %s378 = smul.addr %s377, 4
        %s379 = scalar_lea.vmem [#allocation10], %s378
        // Predicated region
        $region41: #{tpu_custom_call.1} parent=27 // pred_check
          %p380 = pneg %p107
        $region42: #{tpu_custom_call.1} parent=27 // pred_check_branch
          %382 = sbr.rel (%p380) target = $region44
        $region43: #{tpu_custom_call.1} parent=27 // pred_region
          %s383 = sadd.s32 %s30, %s31
          %s384 = smul.u32 2, %s383
          %s386 = ssub.s32 128, 128
          %387 = vsyncadd %s366, %s386
          %s388 = smul.addr %s384, 64
          %s389 = scalar_lea.hbm %s2, %s388
          %s391 = sshll.u32 %s369, 4
          %s392 = int_to_ptr.vmem [resolvable:$true] %s391
          %394 = dma.vmem_to_hbm [thread:$0]  %s392, 128, %s389, %s366
        $region44: #{tpu_custom_call.1} parent=27 // pred_fallthru
          _
        // Predicated region
        $region45: #{tpu_custom_call.1} parent=27 // pred_check
          %p395 = pneg %p133
        $region46: #{tpu_custom_call.1} parent=27 // pred_check_branch
          %397 = sbr.rel (%p395) target = $region48
        $region47: #{tpu_custom_call.1} parent=27 // pred_region
          %s399 = ssub.s32 64, 64
          %400 = vsyncadd %s371, %s399
          %s401 = smul.addr %s30, 64
          %s402 = scalar_lea.hbm %s3, %s401
          %s404 = sshll.u32 %s374, 4
          %s405 = int_to_ptr.vmem [resolvable:$true] %s404
          %407 = dma.vmem_to_hbm [thread:$0]  %s405, 64, %s402, %s371
        $region48: #{tpu_custom_call.1} parent=27 // pred_fallthru
          _
        // Predicated region
        $region49: #{tpu_custom_call.1} parent=27 // pred_check
          %p408 = pneg %p159
        $region50: #{tpu_custom_call.1} parent=27 // pred_check_branch
          %410 = sbr.rel (%p408) target = $region52
        $region51: #{tpu_custom_call.1} parent=27 // pred_region
          %s412 = ssub.s32 64, 64
          %413 = vsyncadd %s376, %s412
          %s414 = smul.addr %s30, 64
          %s415 = scalar_lea.hbm %s4, %s414
          %s417 = sshll.u32 %s379, 4
          %s418 = int_to_ptr.vmem [resolvable:$true] %s417
          %420 = dma.vmem_to_hbm [thread:$0]  %s418, 64, %s415, %s376
        $region52: #{tpu_custom_call.1} parent=27 // pred_fallthru
          _
      $region28: #{tpu_custom_call.1} parent=5 // pred_fallthru
        _
      %p421 = scmp.le.s32.totalorder 2, %s21
      // Predicated region
      $region53: #{tpu_custom_call.1} parent=5 // pred_check
        %p422 = pneg %p421
      $region54: #{tpu_custom_call.1} parent=5 // pred_check_branch
        %424 = sbr.rel (%p422) target = $region56
      $region55: #{tpu_custom_call.1} parent=5 // pred_region
        %s425 = ssub.s32 %s21, 2
        // Predicated region
        $region57: #{tpu_custom_call.1} parent=55 // pred_check
          %p426 = pneg %p113
        $region58: #{tpu_custom_call.1} parent=55 // pred_check_branch
          %428 = sbr.rel (%p426) target = $region60
        $region59: #{tpu_custom_call.1} parent=55 // pred_region
          %s429 = sand.u32 %s98, 1
          %s430 = scalar_lea.sflag [#allocation4], %s429
          %s431 = sand.u32 %s98, 1
          %s432 = smul.addr %s431, 8
          %s433 = scalar_lea.vmem [#allocation7], %s432
          %434 = dma.done %s430, 128
        $region60: #{tpu_custom_call.1} parent=55 // pred_fallthru
          _
        // Predicated region
        $region61: #{tpu_custom_call.1} parent=55 // pred_check
          %p435 = pneg %p139
        $region62: #{tpu_custom_call.1} parent=55 // pred_check_branch
          %437 = sbr.rel (%p435) target = $region64
        $region63: #{tpu_custom_call.1} parent=55 // pred_region
          %s438 = sand.u32 %s27, 1
          %s439 = scalar_lea.sflag [#allocation9], %s438
          %s440 = sand.u32 %s124, 1
          %s441 = smul.addr %s440, 4
          %s442 = scalar_lea.vmem [#allocation8], %s441
          %443 = dma.done %s439, 64
        $region64: #{tpu_custom_call.1} parent=55 // pred_fallthru
          _
        // Predicated region
        $region65: #{tpu_custom_call.1} parent=55 // pred_check
          %p444 = pneg %p165
        $region66: #{tpu_custom_call.1} parent=55 // pred_check_branch
          %446 = sbr.rel (%p444) target = $region68
        $region67: #{tpu_custom_call.1} parent=55 // pred_region
          %s447 = sand.u32 %s27, 1
          %s448 = scalar_lea.sflag [#allocation9], %s447
          %s449 = sand.u32 %s150, 1
          %s450 = smul.addr %s449, 4
          %s451 = scalar_lea.vmem [#allocation10], %s450
          %452 = dma.done %s448, 64
        $region68: #{tpu_custom_call.1} parent=55 // pred_fallthru
          _
      $region56: #{tpu_custom_call.1} parent=5 // pred_fallthru
        _
    $region6: #{tpu_custom_call.1} parent=1 // loop_footer
      %s25 = sadd.s32 1, %s21
    $region7: #{tpu_custom_call.1} parent=1 // loop_footer_branch
      %20 = sbr.rel target = $region3
    $region8: #{tpu_custom_call.1} parent=1 // loop_exit
      _
    %453 = vsyncpa [#allocation3], 1
    %s454 = scalar_lea.sflag [#allocation3], 1
    %455 = vsyncpa %s454, 1
    %456 = vsyncpa [#allocation6], 1
    %457 = vsyncpa [#allocation4], 1
    %s458 = scalar_lea.sflag [#allocation4], 1
    %459 = vsyncpa %s458, 1
    %460 = vsyncpa [#allocation9], 1
    %s461 = scalar_lea.sflag [#allocation9], 1
    %462 = vsyncpa %s461, 1

</llo_original>
